<compile_context>
chip_gen: v5e
topology: v5e:2x2
jax: 0.10.0
libtpu: 0.0.40
codegen_flags: <defaults>
</compile_context>

<pallas_src>
import jax
import jax.numpy as jnp
from jax.experimental import pallas as pl
from jax.experimental.pallas import tpu as pltpu

STATE_DIM = 9
ACTION_DIM = 7
HIDDEN_DIM = 256
HEAD_WIDTH = 128   # lane-dense fused head output width
STD_COL = 64       # log_std columns start here inside the fused head


def policy_kernel(x_ref, w1_ref, b1_ref, w2_ref, b2_ref, wh_ref, bh_ref,
                  out_ref):
    x = x_ref[...]  # (TB, STATE_DIM) f32

    # fc1 + relu (f32 x f32; K=9 is trivial either way)
    h1 = jnp.dot(x, w1_ref[...], preferred_element_type=jnp.float32) + b1_ref[...]
    h1 = jnp.maximum(h1, 0.0)

    # fc2 + relu: bf16 operands into the MXU, f32 accumulation, f32 elementwise
    h2 = jnp.dot(h1.astype(jnp.bfloat16), w2_ref[...],
                 preferred_element_type=jnp.float32) + b2_ref[...]
    h2 = jnp.maximum(h2, 0.0)

    # fused mean|log_std head: single 128-lane matmul + bias
    head = jnp.dot(h2.astype(jnp.bfloat16), wh_ref[...],
                   preferred_element_type=jnp.float32) + bh_ref[...]

    # clamp+exp only on the std lanes; clip/where are VALU, exp is EUP — both
    # have huge slack under the MXU path.
    lane = jax.lax.broadcasted_iota(jnp.int32, head.shape, 1)
    std_branch = jnp.exp(jnp.clip(head, -20.0, 2.0))
    out_ref[...] = jnp.where(lane >= STD_COL, std_branch, head)


def policy_forward(state, params, *, block_b=128):
    """state: (B, STATE_DIM) f32.  Returns (mean, std), each (B, ACTION_DIM).

    block_b: batch tile (multiple of 16; raise to 512–2048 for big rollout
    batches — VMEM is nowhere near a constraint for this kernel)."""
    B = state.shape[0]
    w1, b1, w2, b2, wh, bh = params

    tb = block_b
    b_pad = ((B + tb - 1) // tb) * tb
    if b_pad != B:
        state = jnp.pad(state, ((0, b_pad - B), (0, 0)))
    grid = (b_pad // tb,)

    # Weights/biases: constant index_map -> fetched once, VMEM-resident.
    def resident(a):
        return pl.BlockSpec(a.shape, lambda i: (0,) * a.ndim)

    out = pl.pallas_call(
        policy_kernel,
        out_shape=jax.ShapeDtypeStruct((b_pad, HEAD_WIDTH), jnp.float32),
        grid=grid,
        in_specs=[pl.BlockSpec((tb, STATE_DIM), lambda i: (i, 0)),
                  resident(w1), resident(b1), resident(w2), resident(b2),
                  resident(wh), resident(bh)],
        out_specs=pl.BlockSpec((tb, HEAD_WIDTH), lambda i: (i, 0)),
        compiler_params=pltpu.CompilerParams(
            dimension_semantics=("parallel",)),
    )(state, w1, b1, w2, b2, wh, bh)

    # Free layout plumbing: slice the lane-dense slab (and drop batch padding).
    mean = out[:B, :ACTION_DIM]
    std = out[:B, STD_COL:STD_COL + ACTION_DIM]
    return mean, std


def init_params(key):
    """Deterministic init mimicking nn.Linear (uniform +/- 1/sqrt(fan_in)).
    Weights are (in_features, out_features); heads fused + zero-padded to 128
    lanes; fc2 / head weights cast to bf16."""
    def linear(k, fan_in, fan_out):
        kw, kb = jax.random.split(k)
        bound = 1.0 / jnp.sqrt(fan_in)
        w = jax.random.uniform(kw, (fan_in, fan_out), jnp.float32, -bound, bound)
        b = jax.random.uniform(kb, (1, fan_out), jnp.float32, -bound, bound)
        return w, b

    k1, k2, k3, k4 = jax.random.split(key, 4)
    w1, b1 = linear(k1, STATE_DIM, HIDDEN_DIM)
    w2, b2 = linear(k2, HIDDEN_DIM, HIDDEN_DIM)
    wm, bm = linear(k3, HIDDEN_DIM, ACTION_DIM)
    ws, bs = linear(k4, HIDDEN_DIM, ACTION_DIM)

    # Fused lane-dense head: mean -> lanes [0,7), log_std -> lanes [64,71).
    wh = jnp.zeros((HIDDEN_DIM, HEAD_WIDTH), jnp.float32)
    wh = wh.at[:, :ACTION_DIM].set(wm)
    wh = wh.at[:, STD_COL:STD_COL + ACTION_DIM].set(ws)
    bh = jnp.zeros((1, HEAD_WIDTH), jnp.float32)
    bh = bh.at[:, :ACTION_DIM].set(bm[0])
    bh = bh.at[:, STD_COL:STD_COL + ACTION_DIM].set(bs[0])

    return (w1, b1,
            w2.astype(jnp.bfloat16), b2,
            wh.astype(jnp.bfloat16), bh)


def reference_forward(state, params):
    """f32 reference that mirrors the kernel's bf16 rounding of matmul inputs."""
    w1, b1, w2, b2, wh, bh = params
    hp = jax.lax.Precision.HIGHEST
    rb = lambda a: a.astype(jnp.bfloat16).astype(jnp.float32)

    h1 = jnp.maximum(jnp.dot(state, w1, precision=hp) + b1, 0.0)
    h2 = jnp.maximum(
        jnp.dot(rb(h1), w2.astype(jnp.float32), precision=hp) + b2, 0.0)
    head = jnp.dot(rb(h2), wh.astype(jnp.float32), precision=hp) + bh

    mean = head[:, :ACTION_DIM]
    log_std = jnp.clip(head[:, STD_COL:STD_COL + ACTION_DIM], -20.0, 2.0)
    return mean, jnp.exp(log_std)


if __name__ == "__main__":
    key = jax.random.PRNGKey(0)
    k_params, k_state1, k_state2 = jax.random.split(key, 3)

    params = init_params(k_params)

    # Small batch (pads up to one 128-row tile).
    batch = 8
    state = jax.random.normal(k_state1, (batch, STATE_DIM), dtype=jnp.float32)
    mean, std = policy_forward(state, params)
    jax.block_until_ready((mean, std))

    ref_mean, ref_std = reference_forward(state, params)
    assert mean.shape == (batch, ACTION_DIM) and std.shape == (batch, ACTION_DIM)
    assert jnp.allclose(mean, ref_mean, atol=2e-2, rtol=2e-2)
    assert jnp.allclose(std, ref_std, atol=2e-2, rtol=2e-2)
    assert bool(jnp.all(std > 0))

    # Larger ragged batch: exercises multiple grid steps + padding slice-off.
    batch2 = 200
    state2 = jax.random.normal(k_state2, (batch2, STATE_DIM), dtype=jnp.float32)
    mean2, std2 = policy_forward(state2, params)
    jax.block_until_ready((mean2, std2))

    ref_mean2, ref_std2 = reference_forward(state2, params)
    assert mean2.shape == (batch2, ACTION_DIM) and std2.shape == (batch2, ACTION_DIM)
    assert jnp.allclose(mean2, ref_mean2, atol=2e-2, rtol=2e-2)
    assert jnp.allclose(std2, ref_std2, atol=2e-2, rtol=2e-2)
    assert bool(jnp.all(std2 > 0))

    # TODO(synk): sample() (rsample + Normal log_prob) needs host-side RNG /
    # distribution logic; only the deterministic forward pass is kernelized.
    # A follow-up fusion could feed pltpu.prng_random_bits-based noise + the
    # tanh/log_prob math (EUP/VPU-only) into this same call.

    print("KERNEL_OK")
</pallas_src>

<mosaic_0001>
module attributes {stable_mosaic.version = 11 : i64} {
  func.func @policy_kernel(%arg0: i32, %arg1: memref<128x9xf32, #tpu.memory_space<vmem>>, %arg2: memref<9x256xf32, #tpu.memory_space<vmem>>, %arg3: memref<1x256xf32, #tpu.memory_space<vmem>>, %arg4: memref<256x256xbf16, #tpu.memory_space<vmem>>, %arg5: memref<1x256xf32, #tpu.memory_space<vmem>>, %arg6: memref<256x128xbf16, #tpu.memory_space<vmem>>, %arg7: memref<1x128xf32, #tpu.memory_space<vmem>>, %arg8: memref<128x128xf32, #tpu.memory_space<vmem>>) attributes {dimension_semantics = [#tpu.dimension_semantics<parallel>], iteration_bounds = array<i64: 1>, scalar_prefetch = 0 : i64, scratch_operands = 0 : i64, tpu.core_type = #tpu.core_type<tc>, window_params = [{transform_indices = @transform_0, window_bounds = array<i64: 128, 9>}, {pipeline_mode = #tpu.pipeline_mode<synchronous>, transform_indices = @transform_1, window_bounds = array<i64: 9, 256>}, {pipeline_mode = #tpu.pipeline_mode<synchronous>, transform_indices = @transform_2, window_bounds = array<i64: 1, 256>}, {pipeline_mode = #tpu.pipeline_mode<synchronous>, transform_indices = @transform_3, window_bounds = array<i64: 256, 256>}, {pipeline_mode = #tpu.pipeline_mode<synchronous>, transform_indices = @transform_4, window_bounds = array<i64: 1, 256>}, {pipeline_mode = #tpu.pipeline_mode<synchronous>, transform_indices = @transform_5, window_bounds = array<i64: 256, 128>}, {pipeline_mode = #tpu.pipeline_mode<synchronous>, transform_indices = @transform_6, window_bounds = array<i64: 1, 128>}, {transform_indices = @transform_7, window_bounds = array<i64: 128, 128>}]} {
    %c0 = arith.constant 0 : index
    %c0_0 = arith.constant 0 : index
    %0 = vector.load %arg1[%c0, %c0_0] : memref<128x9xf32, #tpu.memory_space<vmem>>, vector<128x9xf32>
    %c0_1 = arith.constant 0 : index
    %c0_2 = arith.constant 0 : index
    %1 = vector.load %arg2[%c0_1, %c0_2] : memref<9x256xf32, #tpu.memory_space<vmem>>, vector<9x256xf32>
    %cst = arith.constant dense<0.000000e+00> : vector<128x256xf32>
    %2 = tpu.matmul %0, %1, %cst {dimension_numbers = #tpu.dot_dimension_numbers<[1], [0], [0], [1], [0, 0, 1, 1], [], []>} : vector<128x9xf32>, vector<9x256xf32>, vector<128x256xf32> -> vector<128x256xf32>
    %c0_3 = arith.constant 0 : index
    %c0_4 = arith.constant 0 : index
    %3 = vector.load %arg3[%c0_3, %c0_4] : memref<1x256xf32, #tpu.memory_space<vmem>>, vector<1x256xf32>
    %4 = vector.broadcast %3 : vector<1x256xf32> to vector<128x256xf32>
    %5 = arith.addf %2, %4 : vector<128x256xf32>
    %cst_5 = arith.constant 0.000000e+00 : f32
    %6 = vector.broadcast %cst_5 : f32 to vector<128x256xf32>
    %7 = arith.maximumf %5, %6 : vector<128x256xf32>
    %8 = arith.truncf %7 : vector<128x256xf32> to vector<128x256xbf16>
    %c0_6 = arith.constant 0 : index
    %c0_7 = arith.constant 0 : index
    %9 = vector.load %arg4[%c0_6, %c0_7] : memref<256x256xbf16, #tpu.memory_space<vmem>>, vector<256x256xbf16>
    %cst_8 = arith.constant dense<0.000000e+00> : vector<128x256xf32>
    %10 = tpu.matmul %8, %9, %cst_8 {dimension_numbers = #tpu.dot_dimension_numbers<[1], [0], [0], [1], [0, 0, 1, 1], [], []>} : vector<128x256xbf16>, vector<256x256xbf16>, vector<128x256xf32> -> vector<128x256xf32>
    %c0_9 = arith.constant 0 : index
    %c0_10 = arith.constant 0 : index
    %11 = vector.load %arg5[%c0_9, %c0_10] : memref<1x256xf32, #tpu.memory_space<vmem>>, vector<1x256xf32>
    %12 = vector.broadcast %11 : vector<1x256xf32> to vector<128x256xf32>
    %13 = arith.addf %10, %12 : vector<128x256xf32>
    %cst_11 = arith.constant 0.000000e+00 : f32
    %14 = vector.broadcast %cst_11 : f32 to vector<128x256xf32>
    %15 = arith.maximumf %13, %14 : vector<128x256xf32>
    %16 = arith.truncf %15 : vector<128x256xf32> to vector<128x256xbf16>
    %c0_12 = arith.constant 0 : index
    %c0_13 = arith.constant 0 : index
    %17 = vector.load %arg6[%c0_12, %c0_13] : memref<256x128xbf16, #tpu.memory_space<vmem>>, vector<256x128xbf16>
    %cst_14 = arith.constant dense<0.000000e+00> : vector<128x128xf32>
    %18 = tpu.matmul %16, %17, %cst_14 {dimension_numbers = #tpu.dot_dimension_numbers<[1], [0], [0], [1], [0, 0, 1, 1], [], []>} : vector<128x256xbf16>, vector<256x128xbf16>, vector<128x128xf32> -> vector<128x128xf32>
    %c0_15 = arith.constant 0 : index
    %c0_16 = arith.constant 0 : index
    %19 = vector.load %arg7[%c0_15, %c0_16] : memref<1x128xf32, #tpu.memory_space<vmem>>, vector<1x128xf32>
    %20 = vector.broadcast %19 : vector<1x128xf32> to vector<128x128xf32>
    %21 = arith.addf %18, %20 : vector<128x128xf32>
    %22 = tpu.iota {dimensions = array<i32: 1>} : vector<128x128xi32>
    %cst_17 = arith.constant -2.000000e+01 : f32
    %cst_18 = arith.constant 2.000000e+00 : f32
    %23 = vector.broadcast %cst_17 : f32 to vector<128x128xf32>
    %24 = arith.maximumf %23, %21 : vector<128x128xf32>
    %25 = vector.broadcast %cst_18 : f32 to vector<128x128xf32>
    %26 = arith.minimumf %25, %24 : vector<128x128xf32>
    %27 = math.exp %26 : vector<128x128xf32>
    %c64_i32 = arith.constant 64 : i32
    %28 = vector.broadcast %c64_i32 : i32 to vector<128x128xi32>
    %29 = arith.cmpi sge, %22, %28 : vector<128x128xi32>
    %30 = arith.select %29, %27, %21 : vector<128x128xi1>, vector<128x128xf32>
    %c0_19 = arith.constant 0 : index
    %c0_20 = arith.constant 0 : index
    %31 = vector.load %arg8[%c0_19, %c0_20] : memref<128x128xf32, #tpu.memory_space<vmem>>, vector<128x128xf32>
    tpu.vector_store %arg8[%c0_19, %c0_20], %30 {strides = array<i32>} : memref<128x128xf32, #tpu.memory_space<vmem>>, vector<128x128xf32>,
    return
  }
  func.func @transform_0(%arg0: i32) -> (i32, i32) {
    %c0_i32 = arith.constant 0 : i32
    %c0_i32_0 = arith.constant 0 : i32
    return %arg0, %c0_i32 : i32, i32
  }
  func.func @transform_1(%arg0: i32) -> (i32, i32) {
    %c0_i32 = arith.constant 0 : i32
    %c0_i32_0 = arith.constant 0 : i32
    %c0_i32_1 = arith.constant 0 : i32
    return %c0_i32, %c0_i32_0 : i32, i32
  }
  func.func @transform_2(%arg0: i32) -> (i32, i32) {
    %c0_i32 = arith.constant 0 : i32
    %c0_i32_0 = arith.constant 0 : i32
    %c0_i32_1 = arith.constant 0 : i32
    return %c0_i32, %c0_i32_0 : i32, i32
  }
  func.func @transform_3(%arg0: i32) -> (i32, i32) {
    %c0_i32 = arith.constant 0 : i32
    %c0_i32_0 = arith.constant 0 : i32
    %c0_i32_1 = arith.constant 0 : i32
    return %c0_i32, %c0_i32_0 : i32, i32
  }
  func.func @transform_4(%arg0: i32) -> (i32, i32) {
    %c0_i32 = arith.constant 0 : i32
    %c0_i32_0 = arith.constant 0 : i32
    %c0_i32_1 = arith.constant 0 : i32
    return %c0_i32, %c0_i32_0 : i32, i32
  }
  func.func @transform_5(%arg0: i32) -> (i32, i32) {
    %c0_i32 = arith.constant 0 : i32
    %c0_i32_0 = arith.constant 0 : i32
    %c0_i32_1 = arith.constant 0 : i32
    return %c0_i32, %c0_i32_0 : i32, i32
  }
  func.func @transform_6(%arg0: i32) -> (i32, i32) {
    %c0_i32 = arith.constant 0 : i32
    %c0_i32_0 = arith.constant 0 : i32
    %c0_i32_1 = arith.constant 0 : i32
    return %c0_i32, %c0_i32_0 : i32, i32
  }
  func.func @transform_7(%arg0: i32) -> (i32, i32) {
    %c0_i32 = arith.constant 0 : i32
    %c0_i32_0 = arith.constant 0 : i32
    return %arg0, %c0_i32 : i32, i32
  }
}

</mosaic_0001>

<llo_original>
// kernel: tpu_custom_call.1
$region0: #{tpu_custom_call.1}
  #allocation0 [shape = 'u32[]', space=smem, size = 0x4, offset = 0x4, fixed_abs, tag = 'smem constant byte address 0x4 - core index']
  #allocation1 [shape = 'u32[72,128]{1,0:T(1,128)}', space=vmem, size = 0x9000, scoped, tag = 'internal scratch']
  %s0 = inlined_call_operand.vmem [shape: f32[128,9], index: 0, kind: input, shape index: {}]
  %s1 = inlined_call_operand.hbm [shape: f32[9,256], index: 1, kind: input, shape index: {}]
  %s2 = inlined_call_operand.vmem [shape: f32[1,256], index: 2, kind: input, shape index: {}]
  %s3 = inlined_call_operand.hbm [shape: bf16[256,256], index: 3, kind: input, shape index: {}]
  %s4 = inlined_call_operand.vmem [shape: f32[1,256], index: 4, kind: input, shape index: {}]
  %s5 = inlined_call_operand.vmem [shape: bf16[256,128], index: 5, kind: input, shape index: {}]
  %s6 = inlined_call_operand.vmem [shape: f32[1,128], index: 6, kind: input, shape index: {}]
  %s7 = inlined_call_operand.hbm [shape: f32[128,128], index: 7, kind: output, shape index: {}]
  %s8 = sld [smem:[#allocation0]]
  $region46: #{tpu_custom_call.1} parent=0
    _
  %s10 = ssub.s32 1, %s8
  %s11 = scalar_select 0, %s10, %s8
  $region1: #{tpu_custom_call.1} parent=0
    #allocation2 [shape = 'u8[16384]{0}', space=vmem, size = 0x4000, scoped, tag = 'input window, operand 1, single buffered']
    #allocation3 [shape = 's32[1]{0}', space=sflag, size = 0x4, scoped, tag = 'scoped memory for tpu_custom_call.1']
    #allocation4 [shape = 's32[1]{0}', space=sflag, size = 0x4, scoped, tag = 'scoped memory for tpu_custom_call.1']
    #allocation5 [shape = 'u8[131072]{0}', space=vmem, size = 0x20000, scoped, tag = 'input window, operand 3, single buffered']
    #allocation6 [shape = 's32[1]{0}', space=sflag, size = 0x4, scoped, tag = 'scoped memory for tpu_custom_call.1']
    #allocation7 [shape = 'u8[65536]{0}', space=vmem, size = 0x10000, scoped, tag = 'output window, operand 0, single buffered']
    %12 = vsyncpa [#allocation3], 0
    %13 = vsyncpa [#allocation6], 0
    %14 = vsyncpa [#allocation4], 0
    // Predicated region
    $region2: #{tpu_custom_call.1} parent=1 // pred_check
      _
    $region3: #{tpu_custom_call.1} parent=1 // pred_check_branch
      %16 = sbr.rel (0) target = $region5
    $region4: #{tpu_custom_call.1} parent=1 // pred_region
      _
    $region5: #{tpu_custom_call.1} parent=1 // pred_fallthru
      _
    // Predicated region
    $region6: #{tpu_custom_call.1} parent=1 // pred_check
      _
    $region7: #{tpu_custom_call.1} parent=1 // pred_check_branch
      %18 = sbr.rel (0) target = $region9
    $region8: #{tpu_custom_call.1} parent=1 // pred_region
      %20 = vsyncadd [#allocation3], 0
      %s21 = sshll.u32 %s1, 4
      %s22 = int_to_ptr.hbm [resolvable:$true] %s21
      %s23 = sshll.u32 [#allocation2], 4
      %s24 = int_to_ptr.vmem [resolvable:$true] %s23
      %29 = dma.hbm_to_vmem [thread:$0]  %s22, 512, %s24, [#allocation3], 256, 256, 16
    $region9: #{tpu_custom_call.1} parent=1 // pred_fallthru
      _
    // Predicated region
    $region10: #{tpu_custom_call.1} parent=1 // pred_check
      _
    $region11: #{tpu_custom_call.1} parent=1 // pred_check_branch
      %31 = sbr.rel (0) target = $region13
    $region12: #{tpu_custom_call.1} parent=1 // pred_region
      _
    $region13: #{tpu_custom_call.1} parent=1 // pred_fallthru
      _
    // Predicated region
    $region14: #{tpu_custom_call.1} parent=1 // pred_check
      _
    $region15: #{tpu_custom_call.1} parent=1 // pred_check_branch
      %33 = sbr.rel (0) target = $region17
    $region16: #{tpu_custom_call.1} parent=1 // pred_region
      %35 = vsyncadd [#allocation6], 0
      %s36 = sshll.u32 %s3, 4
      %s37 = int_to_ptr.hbm [resolvable:$true] %s36
      %s38 = sshll.u32 [#allocation5], 4
      %s39 = int_to_ptr.vmem [resolvable:$true] %s38
      %44 = dma.hbm_to_vmem [thread:$0]  %s37, 4096, %s39, [#allocation6], 128, 128, 8
    $region17: #{tpu_custom_call.1} parent=1 // pred_fallthru
      _
    // Predicated region
    $region18: #{tpu_custom_call.1} parent=1 // pred_check
      _
    $region19: #{tpu_custom_call.1} parent=1 // pred_check_branch
      %46 = sbr.rel (0) target = $region21
    $region20: #{tpu_custom_call.1} parent=1 // pred_region
      _
    $region21: #{tpu_custom_call.1} parent=1 // pred_fallthru
      _
    // Predicated region
    $region22: #{tpu_custom_call.1} parent=1 // pred_check
      _
    $region23: #{tpu_custom_call.1} parent=1 // pred_check_branch
      %48 = sbr.rel (0) target = $region25
    $region24: #{tpu_custom_call.1} parent=1 // pred_region
      _
    $region25: #{tpu_custom_call.1} parent=1 // pred_fallthru
      _
    // Predicated region
    $region26: #{tpu_custom_call.1} parent=1 // pred_check
      _
    $region27: #{tpu_custom_call.1} parent=1 // pred_check_branch
      %50 = sbr.rel (0) target = $region29
    $region28: #{tpu_custom_call.1} parent=1 // pred_region
      _
    $region29: #{tpu_custom_call.1} parent=1 // pred_fallthru
      _
    // Predicated region
    $region30: #{tpu_custom_call.1} parent=1 // pred_check
      _
    $region31: #{tpu_custom_call.1} parent=1 // pred_check_branch
      %52 = sbr.rel (0) target = $region33
    $region32: #{tpu_custom_call.1} parent=1 // pred_region
      %54 = dma.done [#allocation3], 512
    $region33: #{tpu_custom_call.1} parent=1 // pred_fallthru
      _
    // Predicated region
    $region34: #{tpu_custom_call.1} parent=1 // pred_check
      _
    $region35: #{tpu_custom_call.1} parent=1 // pred_check_branch
      %56 = sbr.rel (0) target = $region37
    $region36: #{tpu_custom_call.1} parent=1 // pred_region
      %58 = dma.done [#allocation6], 4096
    $region37: #{tpu_custom_call.1} parent=1 // pred_fallthru
      _
    %v59 = vld [vmem:[%s0] sm:$0xff]
    %v60 = vld [vmem:[%s0 + $0x8] sm:$0xff]
    %v61 = vld [vmem:[%s0 + $0x10] sm:$0xff]
    %v62 = vld [vmem:[%s0 + $0x18] sm:$0xff]
    %v63 = vld [vmem:[%s0 + $0x20] sm:$0xff]
    %v64 = vld [vmem:[%s0 + $0x28] sm:$0xff]
    %v65 = vld [vmem:[%s0 + $0x30] sm:$0xff]
    %v66 = vld [vmem:[%s0 + $0x38] sm:$0xff]
    %v67 = vld [vmem:[%s0 + $0x40] sm:$0xff]
    %v68 = vld [vmem:[%s0 + $0x48] sm:$0xff]
    %v69 = vld [vmem:[%s0 + $0x50] sm:$0xff]
    %v70 = vld [vmem:[%s0 + $0x58] sm:$0xff]
    %v71 = vld [vmem:[%s0 + $0x60] sm:$0xff]
    %v72 = vld [vmem:[%s0 + $0x68] sm:$0xff]
    %v73 = vld [vmem:[%s0 + $0x70] sm:$0xff]
    %v74 = vld [vmem:[%s0 + $0x78] sm:$0xff]
    %v75 = vld [vmem:[#allocation2] sm:$0xff]
    %v76 = vld [vmem:[#allocation2 + $0x8] sm:$0xff]
    %v77 = vld [vmem:[#allocation2 + $0x10] sm:$0x1]
    %v78 = vld [vmem:[#allocation2 + $0x18] sm:$0x1]
    %v79 = vld [vmem:[%s2] sm:$0x3]
    %v81 = vperm.slane %v79, 0
    %v82 = vperm.slane %v79, 1
    %vm85 = vcmask 72704
    %v87 = vsel %vm85, %v59, 0
    %v90 = vsel %vm85, %v60, 0
    %v93 = vsel %vm85, %v61, 0
    %v96 = vsel %vm85, %v62, 0
    %v99 = vsel %vm85, %v63, 0
    %v102 = vsel %vm85, %v64, 0
    %v105 = vsel %vm85, %v65, 0
    %v108 = vsel %vm85, %v66, 0
    %v111 = vsel %vm85, %v67, 0
    %v114 = vsel %vm85, %v68, 0
    %v117 = vsel %vm85, %v69, 0
    %v120 = vsel %vm85, %v70, 0
    %v123 = vsel %vm85, %v71, 0
    %v126 = vsel %vm85, %v72, 0
    %v129 = vsel %vm85, %v73, 0
    %v132 = vsel %vm85, %v74, 0
    %vm134 = vcmask 1040384
    %v136 = vsel %vm134, %v77, 0
    %v139 = vsel %vm134, %v78, 0
    %141 = vmatpush.msra.mxu0 0.0
    %142 = vmatpush.msra.mxu0 0.0
    %143 = vmatpush.msra.mxu0 0.0
    %144 = vmatpush.msra.mxu0 0.0
    %145 = vmatpush.msra.mxu0 0.0
    %146 = vmatpush.msra.mxu0 0.0
    %147 = vmatpush.msra.mxu0 0.0
    %148 = vmatpush.msra.mxu0 0.0
    %149 = vmatpush.msra.mxu0 0.0
    %150 = vmatpush.msra.mxu0 0.0
    %151 = vmatpush.msra.mxu0 0.0
    %152 = vmatpush.msra.mxu0 0.0
    %153 = vmatpush.msra.mxu0 0.0
    %154 = vmatpush.msra.mxu0 0.0
    %155 = vmatpush.msra.mxu0 %v136
    %156 = vmatpush.msra.mxu0 %v75
    %157 = vmatmul.f32.gmra.mxu0 %v87
    %v158 = vpop.f32.mrf.mxu0
    %v159 = vadd.f32 %v81, %v158
    %160 = vmatmul.f32.gmra.mxu0 %v90
    %v161 = vpop.f32.mrf.mxu0
    %v162 = vadd.f32 %v81, %v161
    %163 = vmatmul.f32.gmra.mxu0 %v93
    %v164 = vpop.f32.mrf.mxu0
    %v165 = vadd.f32 %v81, %v164
    %166 = vmatmul.f32.gmra.mxu0 %v96
    %v167 = vpop.f32.mrf.mxu0
    %v168 = vadd.f32 %v81, %v167
    %169 = vmatmul.f32.gmra.mxu0 %v99
    %v170 = vpop.f32.mrf.mxu0
    %v171 = vadd.f32 %v81, %v170
    %172 = vmatmul.f32.gmra.mxu0 %v102
    %v173 = vpop.f32.mrf.mxu0
    %v174 = vadd.f32 %v81, %v173
    %175 = vmatmul.f32.gmra.mxu0 %v105
    %v176 = vpop.f32.mrf.mxu0
    %v177 = vadd.f32 %v81, %v176
    %178 = vmatmul.f32.gmra.mxu0 %v108
    %v179 = vpop.f32.mrf.mxu0
    %v180 = vadd.f32 %v81, %v179
    %181 = vmatmul.f32.gmra.mxu0 %v111
    %v182 = vpop.f32.mrf.mxu0
    %v183 = vadd.f32 %v81, %v182
    %184 = vmatmul.f32.gmra.mxu0 %v114
    %v185 = vpop.f32.mrf.mxu0
    %v186 = vadd.f32 %v81, %v185
    %187 = vmatmul.f32.gmra.mxu0 %v117
    %v188 = vpop.f32.mrf.mxu0
    %v189 = vadd.f32 %v81, %v188
    %190 = vmatmul.f32.gmra.mxu0 %v120
    %v191 = vpop.f32.mrf.mxu0
    %v192 = vadd.f32 %v81, %v191
    %193 = vmatmul.f32.gmra.mxu0 %v123
    %v194 = vpop.f32.mrf.mxu0
    %v195 = vadd.f32 %v81, %v194
    %196 = vmatmul.f32.gmra.mxu0 %v126
    %v197 = vpop.f32.mrf.mxu0
    %v198 = vadd.f32 %v81, %v197
    %199 = vmatmul.f32.gmra.mxu0 %v129
    %v200 = vpop.f32.mrf.mxu0
    %v201 = vadd.f32 %v81, %v200
    %202 = vmatmul.f32.gmra.mxu0 %v132
    %v203 = vpop.f32.mrf.mxu0
    %v204 = vadd.f32 %v81, %v203
    %205 = vdwg.mxu0
    %206 = vmatpush.msra.mxu0 0.0
    %207 = vmatpush.msra.mxu0 0.0
    %208 = vmatpush.msra.mxu0 0.0
    %209 = vmatpush.msra.mxu0 0.0
    %210 = vmatpush.msra.mxu0 0.0
    %211 = vmatpush.msra.mxu0 0.0
    %212 = vmatpush.msra.mxu0 0.0
    %213 = vmatpush.msra.mxu0 0.0
    %214 = vmatpush.msra.mxu0 0.0
    %215 = vmatpush.msra.mxu0 0.0
    %216 = vmatpush.msra.mxu0 0.0
    %217 = vmatpush.msra.mxu0 0.0
    %218 = vmatpush.msra.mxu0 0.0
    %219 = vmatpush.msra.mxu0 0.0
    %220 = vmatpush.msra.mxu0 %v139
    %221 = vmatpush.msra.mxu0 %v76
    %222 = vmatmul.f32.gmra.mxu0 %v87
    %v223 = vpop.f32.mrf.mxu0
    %v224 = vadd.f32 %v82, %v223
    %225 = vmatmul.f32.gmra.mxu0 %v90
    %v226 = vpop.f32.mrf.mxu0
    %v227 = vadd.f32 %v82, %v226
    %228 = vmatmul.f32.gmra.mxu0 %v93
    %v229 = vpop.f32.mrf.mxu0
    %v230 = vadd.f32 %v82, %v229
    %231 = vmatmul.f32.gmra.mxu0 %v96
    %v232 = vpop.f32.mrf.mxu0
    %v233 = vadd.f32 %v82, %v232
    %234 = vmatmul.f32.gmra.mxu0 %v99
    %v235 = vpop.f32.mrf.mxu0
    %v236 = vadd.f32 %v82, %v235
    %237 = vmatmul.f32.gmra.mxu0 %v102
    %v238 = vpop.f32.mrf.mxu0
    %v239 = vadd.f32 %v82, %v238
    %240 = vmatmul.f32.gmra.mxu0 %v105
    %v241 = vpop.f32.mrf.mxu0
    %v242 = vadd.f32 %v82, %v241
    %243 = vmatmul.f32.gmra.mxu0 %v108
    %v244 = vpop.f32.mrf.mxu0
    %v245 = vadd.f32 %v82, %v244
    %246 = vmatmul.f32.gmra.mxu0 %v111
    %v247 = vpop.f32.mrf.mxu0
    %v248 = vadd.f32 %v82, %v247
    %249 = vmatmul.f32.gmra.mxu0 %v114
    %v250 = vpop.f32.mrf.mxu0
    %v251 = vadd.f32 %v82, %v250
    %252 = vmatmul.f32.gmra.mxu0 %v117
    %v253 = vpop.f32.mrf.mxu0
    %v254 = vadd.f32 %v82, %v253
    %255 = vmatmul.f32.gmra.mxu0 %v120
    %v256 = vpop.f32.mrf.mxu0
    %v257 = vadd.f32 %v82, %v256
    %258 = vmatmul.f32.gmra.mxu0 %v123
    %v259 = vpop.f32.mrf.mxu0
    %v260 = vadd.f32 %v82, %v259
    %261 = vmatmul.f32.gmra.mxu0 %v126
    %v262 = vpop.f32.mrf.mxu0
    %v263 = vadd.f32 %v82, %v262
    %264 = vmatmul.f32.gmra.mxu0 %v129
    %v265 = vpop.f32.mrf.mxu0
    %v266 = vadd.f32 %v82, %v265
    %267 = vmatmul.f32.gmra.mxu0 %v132
    %v268 = vpop.f32.mrf.mxu0
    %v269 = vadd.f32 %v82, %v268
    %270 = vdwg.mxu0
    %v271 = vmax.f32 %v159, 0.0
    %v272 = vmax.f32 %v224, 0.0
    %v273 = vmax.f32 %v162, 0.0
    %v274 = vmax.f32 %v227, 0.0
    %v275 = vmax.f32 %v165, 0.0
    %v276 = vmax.f32 %v230, 0.0
    %v277 = vmax.f32 %v168, 0.0
    %v278 = vmax.f32 %v233, 0.0
    %v279 = vmax.f32 %v171, 0.0
    %v280 = vmax.f32 %v236, 0.0
    %v281 = vmax.f32 %v174, 0.0
    %v282 = vmax.f32 %v239, 0.0
    %v283 = vmax.f32 %v177, 0.0
    %v284 = vmax.f32 %v242, 0.0
    %v285 = vmax.f32 %v180, 0.0
    %v286 = vmax.f32 %v245, 0.0
    %v287 = vmax.f32 %v183, 0.0
    %v288 = vmax.f32 %v248, 0.0
    %v289 = vmax.f32 %v186, 0.0
    %v290 = vmax.f32 %v251, 0.0
    %v291 = vmax.f32 %v189, 0.0
    %v292 = vmax.f32 %v254, 0.0
    %v293 = vmax.f32 %v192, 0.0
    %v294 = vmax.f32 %v257, 0.0
    %v295 = vmax.f32 %v195, 0.0
    %v296 = vmax.f32 %v260, 0.0
    %v297 = vmax.f32 %v198, 0.0
    %v298 = vmax.f32 %v263, 0.0
    %v299 = vmax.f32 %v201, 0.0
    %v300 = vmax.f32 %v266, 0.0
    %v301 = vmax.f32 %v204, 0.0
    %v302 = vmax.f32 %v269, 0.0
    %v303 = vpack.c.bf16 %v273, %v271
    %v304 = vpack.c.bf16 %v274, %v272
    %v305 = vpack.c.bf16 %v277, %v275
    %v306 = vpack.c.bf16 %v278, %v276
    %v307 = vpack.c.bf16 %v281, %v279
    %v308 = vpack.c.bf16 %v282, %v280
    %v309 = vpack.c.bf16 %v285, %v283
    %v310 = vpack.c.bf16 %v286, %v284
    %v311 = vpack.c.bf16 %v289, %v287
    %v312 = vpack.c.bf16 %v290, %v288
    %v313 = vpack.c.bf16 %v293, %v291
    %v314 = vpack.c.bf16 %v294, %v292
    %v315 = vpack.c.bf16 %v297, %v295
    %v316 = vpack.c.bf16 %v298, %v296
    %v317 = vpack.c.bf16 %v301, %v299
    %v318 = vpack.c.bf16 %v302, %v300
    %v319 = vld [vmem:[#allocation5] sm:$0xff]
    %v320 = vld [vmem:[#allocation5 + $0x8] sm:$0xff]
    %v321 = vld [vmem:[#allocation5 + $0x10] sm:$0xff]
    %v322 = vld [vmem:[#allocation5 + $0x18] sm:$0xff]
    %v323 = vld [vmem:[#allocation5 + $0x20] sm:$0xff]
    %v324 = vld [vmem:[#allocation5 + $0x28] sm:$0xff]
    %v325 = vld [vmem:[#allocation5 + $0x30] sm:$0xff]
    %v326 = vld [vmem:[#allocation5 + $0x38] sm:$0xff]
    %v327 = vld [vmem:[#allocation5 + $0x40] sm:$0xff]
    %v328 = vld [vmem:[#allocation5 + $0x48] sm:$0xff]
    %v329 = vld [vmem:[#allocation5 + $0x50] sm:$0xff]
    %v330 = vld [vmem:[#allocation5 + $0x58] sm:$0xff]
    %v331 = vld [vmem:[#allocation5 + $0x60] sm:$0xff]
    %v332 = vld [vmem:[#allocation5 + $0x68] sm:$0xff]
    %v333 = vld [vmem:[#allocation5 + $0x70] sm:$0xff]
    %v334 = vld [vmem:[#allocation5 + $0x78] sm:$0xff]
    %v335 = vld [vmem:[#allocation5 + $0x80] sm:$0xff]
    %v336 = vld [vmem:[#allocation5 + $0x88] sm:$0xff]
    %v337 = vld [vmem:[#allocation5 + $0x90] sm:$0xff]
    %v338 = vld [vmem:[#allocation5 + $0x98] sm:$0xff]
    %v339 = vld [vmem:[#allocation5 + $0xa0] sm:$0xff]
    %v340 = vld [vmem:[#allocation5 + $0xa8] sm:$0xff]
    %v341 = vld [vmem:[#allocation5 + $0xb0] sm:$0xff]
    %v342 = vld [vmem:[#allocation5 + $0xb8] sm:$0xff]
    %v343 = vld [vmem:[#allocation5 + $0xc0] sm:$0xff]
    %v344 = vld [vmem:[#allocation5 + $0xc8] sm:$0xff]
    %v345 = vld [vmem:[#allocation5 + $0xd0] sm:$0xff]
    %v346 = vld [vmem:[#allocation5 + $0xd8] sm:$0xff]
    %v347 = vld [vmem:[#allocation5 + $0xe0] sm:$0xff]
    %v348 = vld [vmem:[#allocation5 + $0xe8] sm:$0xff]
    %v349 = vld [vmem:[#allocation5 + $0xf0] sm:$0xff]
    %v350 = vld [vmem:[#allocation5 + $0xf8] sm:$0xff]
    %v351 = vld [vmem:[%s4] sm:$0x3]
    %v353 = vperm.slane %v351, 0
    %v354 = vperm.slane %v351, 1
    %v389 = vunpack.c.l.b16 %v319
    %v390 = vunpack.c.h.b16 %v319
    %v391 = vunpack.c.l.b16 %v320
    %v392 = vunpack.c.h.b16 %v320
    %v393 = vunpack.c.l.b16 %v321
    %v394 = vunpack.c.h.b16 %v321
    %v395 = vunpack.c.l.b16 %v322
    %v396 = vunpack.c.h.b16 %v322
    %v397 = vunpack.c.l.b16 %v323
    %v398 = vunpack.c.h.b16 %v323
    %v399 = vunpack.c.l.b16 %v324
    %v400 = vunpack.c.h.b16 %v324
    %v401 = vunpack.c.l.b16 %v325
    %v402 = vunpack.c.h.b16 %v325
    %v403 = vunpack.c.l.b16 %v326
    %v404 = vunpack.c.h.b16 %v326
    %v405 = vunpack.c.l.b16 %v327
    %v406 = vunpack.c.h.b16 %v327
    %v407 = vunpack.c.l.b16 %v328
    %v408 = vunpack.c.h.b16 %v328
    %v409 = vunpack.c.l.b16 %v329
    %v410 = vunpack.c.h.b16 %v329
    %v411 = vunpack.c.l.b16 %v330
    %v412 = vunpack.c.h.b16 %v330
    %v413 = vunpack.c.l.b16 %v331
    %v414 = vunpack.c.h.b16 %v331
    %v415 = vunpack.c.l.b16 %v332
    %v416 = vunpack.c.h.b16 %v332
    %v417 = vunpack.c.l.b16 %v333
    %v418 = vunpack.c.h.b16 %v333
    %v419 = vunpack.c.l.b16 %v334
    %v420 = vunpack.c.h.b16 %v334
    %v421 = vunpack.c.l.b16 %v335
    %v422 = vunpack.c.h.b16 %v335
    %v423 = vunpack.c.l.b16 %v336
    %v424 = vunpack.c.h.b16 %v336
    %v425 = vunpack.c.l.b16 %v337
    %v426 = vunpack.c.h.b16 %v337
    %v427 = vunpack.c.l.b16 %v338
    %v428 = vunpack.c.h.b16 %v338
    %v429 = vunpack.c.l.b16 %v339
    %v430 = vunpack.c.h.b16 %v339
    %v431 = vunpack.c.l.b16 %v340
    %v432 = vunpack.c.h.b16 %v340
    %v433 = vunpack.c.l.b16 %v341
    %v434 = vunpack.c.h.b16 %v341
    %v435 = vunpack.c.l.b16 %v342
    %v436 = vunpack.c.h.b16 %v342
    %v437 = vunpack.c.l.b16 %v343
    %v438 = vunpack.c.h.b16 %v343
    %v439 = vunpack.c.l.b16 %v344
    %v440 = vunpack.c.h.b16 %v344
    %v441 = vunpack.c.l.b16 %v345
    %v442 = vunpack.c.h.b16 %v345
    %v443 = vunpack.c.l.b16 %v346
    %v444 = vunpack.c.h.b16 %v346
    %v445 = vunpack.c.l.b16 %v347
    %v446 = vunpack.c.h.b16 %v347
    %v447 = vunpack.c.l.b16 %v348
    %v448 = vunpack.c.h.b16 %v348
    %v449 = vunpack.c.l.b16 %v349
    %v450 = vunpack.c.h.b16 %v349
    %v451 = vunpack.c.l.b16 %v350
    %v452 = vunpack.c.h.b16 %v350
    %v453 = vpack.c.b16 %v391, %v389
    %v454 = vpack.c.b16 %v392, %v390
    %v455 = vpack.c.b16 %v395, %v393
    %v456 = vpack.c.b16 %v396, %v394
    %v457 = vpack.c.b16 %v399, %v397
    %v458 = vpack.c.b16 %v400, %v398
    %v459 = vpack.c.b16 %v403, %v401
    %v460 = vpack.c.b16 %v404, %v402
    %v461 = vpack.c.b16 %v407, %v405
    %v462 = vpack.c.b16 %v408, %v406
    %v463 = vpack.c.b16 %v411, %v409
    %v464 = vpack.c.b16 %v412, %v410
    %v465 = vpack.c.b16 %v415, %v413
    %v466 = vpack.c.b16 %v416, %v414
    %v467 = vpack.c.b16 %v419, %v417
    %v468 = vpack.c.b16 %v420, %v418
    %v469 = vpack.c.b16 %v423, %v421
    %v470 = vpack.c.b16 %v424, %v422
    %v471 = vpack.c.b16 %v427, %v425
    %v472 = vpack.c.b16 %v428, %v426
    %v473 = vpack.c.b16 %v431, %v429
    %v474 = vpack.c.b16 %v432, %v430
    %v475 = vpack.c.b16 %v435, %v433
    %v476 = vpack.c.b16 %v436, %v434
    %v477 = vpack.c.b16 %v439, %v437
    %v478 = vpack.c.b16 %v440, %v438
    %v479 = vpack.c.b16 %v443, %v441
    %v480 = vpack.c.b16 %v444, %v442
    %v481 = vpack.c.b16 %v447, %v445
    %v482 = vpack.c.b16 %v448, %v446
    %v483 = vpack.c.b16 %v451, %v449
    %v484 = vpack.c.b16 %v452, %v450
    %517 = vmatpush.bf16.msra.mxu0 %v467
    %518 = vmatpush.bf16.msra.mxu0 %v465
    %519 = vmatpush.bf16.msra.mxu0 %v463
    %520 = vmatpush.bf16.msra.mxu0 %v461
    %521 = vmatpush.bf16.msra.mxu0 %v459
    %522 = vmatpush.bf16.msra.mxu0 %v457
    %523 = vmatpush.bf16.msra.mxu0 %v455
    %524 = vmatpush.bf16.msra.mxu0 %v453
    %525 = vmatmul.bf16.gmra.mxu0 %v303
    %v526 = vpop.f32.mrf.mxu0
    %v527 = vadd.f32 %v353, %v526
    %v528 = vpop.f32.mrf.mxu0
    %v529 = vadd.f32 %v353, %v528
    %530 = vmatmul.bf16.gmra.mxu0 %v305
    %v531 = vpop.f32.mrf.mxu0
    %v532 = vadd.f32 %v353, %v531
    %v533 = vpop.f32.mrf.mxu0
    %v534 = vadd.f32 %v353, %v533
    %535 = vmatmul.bf16.gmra.mxu0 %v307
    %v536 = vpop.f32.mrf.mxu0
    %v537 = vadd.f32 %v353, %v536
    %v538 = vpop.f32.mrf.mxu0
    %v539 = vadd.f32 %v353, %v538
    %540 = vmatmul.bf16.gmra.mxu0 %v309
    %v541 = vpop.f32.mrf.mxu0
    %v542 = vadd.f32 %v353, %v541
    %v543 = vpop.f32.mrf.mxu0
    %v544 = vadd.f32 %v353, %v543
    %545 = vmatmul.bf16.gmra.mxu0 %v311
    %v546 = vpop.f32.mrf.mxu0
    %v547 = vadd.f32 %v353, %v546
    %v548 = vpop.f32.mrf.mxu0
    %v549 = vadd.f32 %v353, %v548
    %550 = vmatmul.bf16.gmra.mxu0 %v313
    %v551 = vpop.f32.mrf.mxu0
    %v552 = vadd.f32 %v353, %v551
    %v553 = vpop.f32.mrf.mxu0
    %v554 = vadd.f32 %v353, %v553
    %555 = vmatmul.bf16.gmra.mxu0 %v315
    %v556 = vpop.f32.mrf.mxu0
    %v557 = vadd.f32 %v353, %v556
    %v558 = vpop.f32.mrf.mxu0
    %v559 = vadd.f32 %v353, %v558
    %560 = vmatmul.bf16.gmra.mxu0 %v317
    %v561 = vpop.f32.mrf.mxu0
    %v562 = vadd.f32 %v353, %v561
    %v563 = vpop.f32.mrf.mxu0
    %v564 = vadd.f32 %v353, %v563
    %565 = vdwg.mxu0
    %566 = vmatpush.bf16.msra.mxu0 %v483
    %567 = vmatpush.bf16.msra.mxu0 %v481
    %568 = vmatpush.bf16.msra.mxu0 %v479
    %569 = vmatpush.bf16.msra.mxu0 %v477
    %570 = vmatpush.bf16.msra.mxu0 %v475
    %571 = vmatpush.bf16.msra.mxu0 %v473
    %572 = vmatpush.bf16.msra.mxu0 %v471
    %573 = vmatpush.bf16.msra.mxu0 %v469
    %574 = vmatmul.bf16.gmra.mxu0 %v304
    %v575 = vpop.f32.mrf.mxu0
    %v576 = vadd.f32 %v527, %v575
    %v577 = vpop.f32.mrf.mxu0
    %v578 = vadd.f32 %v529, %v577
    %579 = vmatmul.bf16.gmra.mxu0 %v306
    %v580 = vpop.f32.mrf.mxu0
    %v581 = vadd.f32 %v532, %v580
    %v582 = vpop.f32.mrf.mxu0
    %v583 = vadd.f32 %v534, %v582
    %584 = vmatmul.bf16.gmra.mxu0 %v308
    %v585 = vpop.f32.mrf.mxu0
    %v586 = vadd.f32 %v537, %v585
    %v587 = vpop.f32.mrf.mxu0
    %v588 = vadd.f32 %v539, %v587
    %589 = vmatmul.bf16.gmra.mxu0 %v310
    %v590 = vpop.f32.mrf.mxu0
    %v591 = vadd.f32 %v542, %v590
    %v592 = vpop.f32.mrf.mxu0
    %v593 = vadd.f32 %v544, %v592
    %594 = vmatmul.bf16.gmra.mxu0 %v312
    %v595 = vpop.f32.mrf.mxu0
    %v596 = vadd.f32 %v547, %v595
    %v597 = vpop.f32.mrf.mxu0
    %v598 = vadd.f32 %v549, %v597
    %599 = vmatmul.bf16.gmra.mxu0 %v314
    %v600 = vpop.f32.mrf.mxu0
    %v601 = vadd.f32 %v552, %v600
    %v602 = vpop.f32.mrf.mxu0
    %v603 = vadd.f32 %v554, %v602
    %604 = vmatmul.bf16.gmra.mxu0 %v316
    %v605 = vpop.f32.mrf.mxu0
    %v606 = vadd.f32 %v557, %v605
    %v607 = vpop.f32.mrf.mxu0
    %v608 = vadd.f32 %v559, %v607
    %609 = vmatmul.bf16.gmra.mxu0 %v318
    %v610 = vpop.f32.mrf.mxu0
    %v611 = vadd.f32 %v562, %v610
    %v612 = vpop.f32.mrf.mxu0
    %v613 = vadd.f32 %v564, %v612
    %614 = vdwg.mxu0
    %615 = vmatpush.bf16.msra.mxu0 %v468
    %616 = vmatpush.bf16.msra.mxu0 %v466
    %617 = vmatpush.bf16.msra.mxu0 %v464
    %618 = vmatpush.bf16.msra.mxu0 %v462
    %619 = vmatpush.bf16.msra.mxu0 %v460
    %620 = vmatpush.bf16.msra.mxu0 %v458
    %621 = vmatpush.bf16.msra.mxu0 %v456
    %622 = vmatpush.bf16.msra.mxu0 %v454
    %623 = vmatmul.bf16.gmra.mxu0 %v303
    %v624 = vpop.f32.mrf.mxu0
    %v625 = vadd.f32 %v354, %v624
    %v626 = vpop.f32.mrf.mxu0
    %v627 = vadd.f32 %v354, %v626
    %628 = vmatmul.bf16.gmra.mxu0 %v305
    %v629 = vpop.f32.mrf.mxu0
    %v630 = vadd.f32 %v354, %v629
    %v631 = vpop.f32.mrf.mxu0
    %v632 = vadd.f32 %v354, %v631
    %633 = vmatmul.bf16.gmra.mxu0 %v307
    %v634 = vpop.f32.mrf.mxu0
    %v635 = vadd.f32 %v354, %v634
    %v636 = vpop.f32.mrf.mxu0
    %v637 = vadd.f32 %v354, %v636
    %638 = vmatmul.bf16.gmra.mxu0 %v309
    %v639 = vpop.f32.mrf.mxu0
    %v640 = vadd.f32 %v354, %v639
    %v641 = vpop.f32.mrf.mxu0
    %v642 = vadd.f32 %v354, %v641
    %643 = vmatmul.bf16.gmra.mxu0 %v311
    %v644 = vpop.f32.mrf.mxu0
    %v645 = vadd.f32 %v354, %v644
    %v646 = vpop.f32.mrf.mxu0
    %v647 = vadd.f32 %v354, %v646
    %648 = vmatmul.bf16.gmra.mxu0 %v313
    %v649 = vpop.f32.mrf.mxu0
    %v650 = vadd.f32 %v354, %v649
    %v651 = vpop.f32.mrf.mxu0
    %v652 = vadd.f32 %v354, %v651
    %653 = vmatmul.bf16.gmra.mxu0 %v315
    %v654 = vpop.f32.mrf.mxu0
    %v655 = vadd.f32 %v354, %v654
    %v656 = vpop.f32.mrf.mxu0
    %v657 = vadd.f32 %v354, %v656
    %658 = vmatmul.bf16.gmra.mxu0 %v317
    %v659 = vpop.f32.mrf.mxu0
    %v660 = vadd.f32 %v354, %v659
    %v661 = vpop.f32.mrf.mxu0
    %v662 = vadd.f32 %v354, %v661
    %663 = vdwg.mxu0
    %664 = vmatpush.bf16.msra.mxu0 %v484
    %665 = vmatpush.bf16.msra.mxu0 %v482
    %666 = vmatpush.bf16.msra.mxu0 %v480
    %667 = vmatpush.bf16.msra.mxu0 %v478
    %668 = vmatpush.bf16.msra.mxu0 %v476
    %669 = vmatpush.bf16.msra.mxu0 %v474
    %670 = vmatpush.bf16.msra.mxu0 %v472
    %671 = vmatpush.bf16.msra.mxu0 %v470
    %672 = vmatmul.bf16.gmra.mxu0 %v304
    %v673 = vpop.f32.mrf.mxu0
    %v674 = vadd.f32 %v625, %v673
    %v675 = vpop.f32.mrf.mxu0
    %v676 = vadd.f32 %v627, %v675
    %677 = vmatmul.bf16.gmra.mxu0 %v306
    %v678 = vpop.f32.mrf.mxu0
    %v679 = vadd.f32 %v630, %v678
    %v680 = vpop.f32.mrf.mxu0
    %v681 = vadd.f32 %v632, %v680
    %682 = vmatmul.bf16.gmra.mxu0 %v308
    %v683 = vpop.f32.mrf.mxu0
    %v684 = vadd.f32 %v635, %v683
    %v685 = vpop.f32.mrf.mxu0
    %v686 = vadd.f32 %v637, %v685
    %687 = vmatmul.bf16.gmra.mxu0 %v310
    %v688 = vpop.f32.mrf.mxu0
    %v689 = vadd.f32 %v640, %v688
    %v690 = vpop.f32.mrf.mxu0
    %v691 = vadd.f32 %v642, %v690
    %692 = vmatmul.bf16.gmra.mxu0 %v312
    %v693 = vpop.f32.mrf.mxu0
    %v694 = vadd.f32 %v645, %v693
    %v695 = vpop.f32.mrf.mxu0
    %v696 = vadd.f32 %v647, %v695
    %697 = vmatmul.bf16.gmra.mxu0 %v314
    %v698 = vpop.f32.mrf.mxu0
    %v699 = vadd.f32 %v650, %v698
    %v700 = vpop.f32.mrf.mxu0
    %v701 = vadd.f32 %v652, %v700
    %702 = vmatmul.bf16.gmra.mxu0 %v316
    %v703 = vpop.f32.mrf.mxu0
    %v704 = vadd.f32 %v655, %v703
    %v705 = vpop.f32.mrf.mxu0
    %v706 = vadd.f32 %v657, %v705
    %707 = vmatmul.bf16.gmra.mxu0 %v318
    %v708 = vpop.f32.mrf.mxu0
    %v709 = vadd.f32 %v660, %v708
    %v710 = vpop.f32.mrf.mxu0
    %v711 = vadd.f32 %v662, %v710
    %712 = vdwg.mxu0
    %v713 = vmax.f32 %v576, 0.0
    %v714 = vmax.f32 %v674, 0.0
    %v715 = vmax.f32 %v578, 0.0
    %v716 = vmax.f32 %v676, 0.0
    %v717 = vmax.f32 %v581, 0.0
    %v718 = vmax.f32 %v679, 0.0
    %v719 = vmax.f32 %v583, 0.0
    %v720 = vmax.f32 %v681, 0.0
    %v721 = vmax.f32 %v586, 0.0
    %v722 = vmax.f32 %v684, 0.0
    %v723 = vmax.f32 %v588, 0.0
    %v724 = vmax.f32 %v686, 0.0
    %v725 = vmax.f32 %v591, 0.0
    %v726 = vmax.f32 %v689, 0.0
    %v727 = vmax.f32 %v593, 0.0
    %v728 = vmax.f32 %v691, 0.0
    %v729 = vmax.f32 %v596, 0.0
    %v730 = vmax.f32 %v694, 0.0
    %v731 = vmax.f32 %v598, 0.0
    %v732 = vmax.f32 %v696, 0.0
    %v733 = vmax.f32 %v601, 0.0
    %v734 = vmax.f32 %v699, 0.0
    %v735 = vmax.f32 %v603, 0.0
    %v736 = vmax.f32 %v701, 0.0
    %v737 = vmax.f32 %v606, 0.0
    %v738 = vmax.f32 %v704, 0.0
    %v739 = vmax.f32 %v608, 0.0
    %v740 = vmax.f32 %v706, 0.0
    %v741 = vmax.f32 %v611, 0.0
    %v742 = vmax.f32 %v709, 0.0
    %v743 = vmax.f32 %v613, 0.0
    %v744 = vmax.f32 %v711, 0.0
    %v745 = vpack.c.bf16 %v715, %v713
    %v746 = vpack.c.bf16 %v716, %v714
    %v747 = vpack.c.bf16 %v719, %v717
    %v748 = vpack.c.bf16 %v720, %v718
    %v749 = vpack.c.bf16 %v723, %v721
    %v750 = vpack.c.bf16 %v724, %v722
    %v751 = vpack.c.bf16 %v727, %v725
    %v752 = vpack.c.bf16 %v728, %v726
    %v753 = vpack.c.bf16 %v731, %v729
    %v754 = vpack.c.bf16 %v732, %v730
    %v755 = vpack.c.bf16 %v735, %v733
    %v756 = vpack.c.bf16 %v736, %v734
    %v757 = vpack.c.bf16 %v739, %v737
    %v758 = vpack.c.bf16 %v740, %v738
    %v759 = vpack.c.bf16 %v743, %v741
    %v760 = vpack.c.bf16 %v744, %v742
    %v761 = vld [vmem:[%s5] sm:$0xf]
    %v762 = vld [vmem:[%s5 + $0x4] sm:$0xf]
    %v763 = vld [vmem:[%s5 + $0x8] sm:$0xf]
    %v764 = vld [vmem:[%s5 + $0xc] sm:$0xf]
    %v765 = vld [vmem:[%s5 + $0x10] sm:$0xf]
    %v766 = vld [vmem:[%s5 + $0x14] sm:$0xf]
    %v767 = vld [vmem:[%s5 + $0x18] sm:$0xf]
    %v768 = vld [vmem:[%s5 + $0x1c] sm:$0xf]
    %v769 = vld [vmem:[%s5 + $0x20] sm:$0xf]
    %v770 = vld [vmem:[%s5 + $0x24] sm:$0xf]
    %v771 = vld [vmem:[%s5 + $0x28] sm:$0xf]
    %v772 = vld [vmem:[%s5 + $0x2c] sm:$0xf]
    %v773 = vld [vmem:[%s5 + $0x30] sm:$0xf]
    %v774 = vld [vmem:[%s5 + $0x34] sm:$0xf]
    %v775 = vld [vmem:[%s5 + $0x38] sm:$0xf]
    %v776 = vld [vmem:[%s5 + $0x3c] sm:$0xf]
    %v777 = vld [vmem:[%s5 + $0x40] sm:$0xf]
    %v778 = vld [vmem:[%s5 + $0x44] sm:$0xf]
    %v779 = vld [vmem:[%s5 + $0x48] sm:$0xf]
    %v780 = vld [vmem:[%s5 + $0x4c] sm:$0xf]
    %v781 = vld [vmem:[%s5 + $0x50] sm:$0xf]
    %v782 = vld [vmem:[%s5 + $0x54] sm:$0xf]
    %v783 = vld [vmem:[%s5 + $0x58] sm:$0xf]
    %v784 = vld [vmem:[%s5 + $0x5c] sm:$0xf]
    %v785 = vld [vmem:[%s5 + $0x60] sm:$0xf]
    %v786 = vld [vmem:[%s5 + $0x64] sm:$0xf]
    %v787 = vld [vmem:[%s5 + $0x68] sm:$0xf]
    %v788 = vld [vmem:[%s5 + $0x6c] sm:$0xf]
    %v789 = vld [vmem:[%s5 + $0x70] sm:$0xf]
    %v790 = vld [vmem:[%s5 + $0x74] sm:$0xf]
    %v791 = vld [vmem:[%s5 + $0x78] sm:$0xf]
    %v792 = vld [vmem:[%s5 + $0x7c] sm:$0xf]
    %v793 = vld [vmem:[%s6] sm:$0x1]
    %v795 = vperm.slane %v793, 0
    %v829 = vunpack.c.l.b16 %v761
    %v830 = vunpack.c.l.b16 %v762
    %v831 = vunpack.c.l.b16 %v763
    %v832 = vunpack.c.l.b16 %v764
    %v833 = vunpack.c.l.b16 %v765
    %v834 = vunpack.c.l.b16 %v766
    %v835 = vunpack.c.l.b16 %v767
    %v836 = vunpack.c.l.b16 %v768
    %v837 = vunpack.c.l.b16 %v769
    %v838 = vunpack.c.l.b16 %v770
    %v839 = vunpack.c.l.b16 %v771
    %v840 = vunpack.c.l.b16 %v772
    %v841 = vunpack.c.l.b16 %v773
    %v842 = vunpack.c.l.b16 %v774
    %v843 = vunpack.c.l.b16 %v775
    %v844 = vunpack.c.l.b16 %v776
    %v845 = vunpack.c.l.b16 %v777
    %v846 = vunpack.c.l.b16 %v778
    %v847 = vunpack.c.l.b16 %v779
    %v848 = vunpack.c.l.b16 %v780
    %v849 = vunpack.c.l.b16 %v781
    %v850 = vunpack.c.l.b16 %v782
    %v851 = vunpack.c.l.b16 %v783
    %v852 = vunpack.c.l.b16 %v784
    %v853 = vunpack.c.l.b16 %v785
    %v854 = vunpack.c.l.b16 %v786
    %v855 = vunpack.c.l.b16 %v787
    %v856 = vunpack.c.l.b16 %v788
    %v857 = vunpack.c.l.b16 %v789
    %v858 = vunpack.c.l.b16 %v790
    %v859 = vunpack.c.l.b16 %v791
    %v860 = vunpack.c.l.b16 %v792
    %v861 = vpack.c.b16 %v830, %v829
    %v862 = vpack.c.b16 %v832, %v831
    %v863 = vpack.c.b16 %v834, %v833
    %v864 = vpack.c.b16 %v836, %v835
    %v865 = vpack.c.b16 %v838, %v837
    %v866 = vpack.c.b16 %v840, %v839
    %v867 = vpack.c.b16 %v842, %v841
    %v868 = vpack.c.b16 %v844, %v843
    %v869 = vpack.c.b16 %v846, %v845
    %v870 = vpack.c.b16 %v848, %v847
    %v871 = vpack.c.b16 %v850, %v849
    %v872 = vpack.c.b16 %v852, %v851
    %v873 = vpack.c.b16 %v854, %v853
    %v874 = vpack.c.b16 %v856, %v855
    %v875 = vpack.c.b16 %v858, %v857
    %v876 = vpack.c.b16 %v860, %v859
    %893 = vmatpush.bf16.msra.mxu0 %v868
    %894 = vmatpush.bf16.msra.mxu0 %v867
    %895 = vmatpush.bf16.msra.mxu0 %v866
    %896 = vmatpush.bf16.msra.mxu0 %v865
    %897 = vmatpush.bf16.msra.mxu0 %v864
    %898 = vmatpush.bf16.msra.mxu0 %v863
    %899 = vmatpush.bf16.msra.mxu0 %v862
    %900 = vmatpush.bf16.msra.mxu0 %v861
    %901 = vmatmul.bf16.gmra.mxu0 %v745
    %v902 = vpop.f32.mrf.mxu0
    %v903 = vadd.f32 %v795, %v902
    %v904 = vpop.f32.mrf.mxu0
    %v905 = vadd.f32 %v795, %v904
    %906 = vmatmul.bf16.gmra.mxu0 %v747
    %v907 = vpop.f32.mrf.mxu0
    %v908 = vadd.f32 %v795, %v907
    %v909 = vpop.f32.mrf.mxu0
    %v910 = vadd.f32 %v795, %v909
    %911 = vmatmul.bf16.gmra.mxu0 %v749
    %v912 = vpop.f32.mrf.mxu0
    %v913 = vadd.f32 %v795, %v912
    %v914 = vpop.f32.mrf.mxu0
    %v915 = vadd.f32 %v795, %v914
    %916 = vmatmul.bf16.gmra.mxu0 %v751
    %v917 = vpop.f32.mrf.mxu0
    %v918 = vadd.f32 %v795, %v917
    %v919 = vpop.f32.mrf.mxu0
    %v920 = vadd.f32 %v795, %v919
    %921 = vmatmul.bf16.gmra.mxu0 %v753
    %v922 = vpop.f32.mrf.mxu0
    %v923 = vadd.f32 %v795, %v922
    %v924 = vpop.f32.mrf.mxu0
    %v925 = vadd.f32 %v795, %v924
    %926 = vmatmul.bf16.gmra.mxu0 %v755
    %v927 = vpop.f32.mrf.mxu0
    %v928 = vadd.f32 %v795, %v927
    %v929 = vpop.f32.mrf.mxu0
    %v930 = vadd.f32 %v795, %v929
    %931 = vmatmul.bf16.gmra.mxu0 %v757
    %v932 = vpop.f32.mrf.mxu0
    %v933 = vadd.f32 %v795, %v932
    %v934 = vpop.f32.mrf.mxu0
    %v935 = vadd.f32 %v795, %v934
    %936 = vmatmul.bf16.gmra.mxu0 %v759
    %v937 = vpop.f32.mrf.mxu0
    %v938 = vadd.f32 %v795, %v937
    %v939 = vpop.f32.mrf.mxu0
    %v940 = vadd.f32 %v795, %v939
    %941 = vdwg.mxu0
    %942 = vmatpush.bf16.msra.mxu0 %v876
    %943 = vmatpush.bf16.msra.mxu0 %v875
    %944 = vmatpush.bf16.msra.mxu0 %v874
    %945 = vmatpush.bf16.msra.mxu0 %v873
    %946 = vmatpush.bf16.msra.mxu0 %v872
    %947 = vmatpush.bf16.msra.mxu0 %v871
    %948 = vmatpush.bf16.msra.mxu0 %v870
    %949 = vmatpush.bf16.msra.mxu0 %v869
    %950 = vmatmul.bf16.gmra.mxu0 %v746
    %v951 = vpop.f32.mrf.mxu0
    %v952 = vadd.f32 %v903, %v951
    %v953 = vpop.f32.mrf.mxu0
    %v954 = vadd.f32 %v905, %v953
    %955 = vmatmul.bf16.gmra.mxu0 %v748
    %v956 = vpop.f32.mrf.mxu0
    %v957 = vadd.f32 %v908, %v956
    %v958 = vpop.f32.mrf.mxu0
    %v959 = vadd.f32 %v910, %v958
    %960 = vmatmul.bf16.gmra.mxu0 %v750
    %v961 = vpop.f32.mrf.mxu0
    %v962 = vadd.f32 %v913, %v961
    %v963 = vpop.f32.mrf.mxu0
    %v964 = vadd.f32 %v915, %v963
    %965 = vmatmul.bf16.gmra.mxu0 %v752
    %v966 = vpop.f32.mrf.mxu0
    %v967 = vadd.f32 %v918, %v966
    %v968 = vpop.f32.mrf.mxu0
    %v969 = vadd.f32 %v920, %v968
    %970 = vmatmul.bf16.gmra.mxu0 %v754
    %v971 = vpop.f32.mrf.mxu0
    %v972 = vadd.f32 %v923, %v971
    %v973 = vpop.f32.mrf.mxu0
    %v974 = vadd.f32 %v925, %v973
    %975 = vmatmul.bf16.gmra.mxu0 %v756
    %v976 = vpop.f32.mrf.mxu0
    %v977 = vadd.f32 %v928, %v976
    %v978 = vpop.f32.mrf.mxu0
    %v979 = vadd.f32 %v930, %v978
    %980 = vmatmul.bf16.gmra.mxu0 %v758
    %v981 = vpop.f32.mrf.mxu0
    %v982 = vadd.f32 %v933, %v981
    %v983 = vpop.f32.mrf.mxu0
    %v984 = vadd.f32 %v935, %v983
    %985 = vmatmul.bf16.gmra.mxu0 %v760
    %v986 = vpop.f32.mrf.mxu0
    %v987 = vadd.f32 %v938, %v986
    %v988 = vpop.f32.mrf.mxu0
    %v989 = vadd.f32 %v940, %v988
    %990 = vdwg.mxu0
    %v991 = vlaneseq
    %v992 = vand.u32 %v991, 127
    %v993 = vmax.f32 %v952, -20.0
    %v994 = vmax.f32 %v954, -20.0
    %v995 = vmax.f32 %v957, -20.0
    %v996 = vmax.f32 %v959, -20.0
    %v997 = vmax.f32 %v962, -20.0
    %v998 = vmax.f32 %v964, -20.0
    %v999 = vmax.f32 %v967, -20.0
    %v1000 = vmax.f32 %v969, -20.0
    %v1001 = vmax.f32 %v972, -20.0
    %v1002 = vmax.f32 %v974, -20.0
    %v1003 = vmax.f32 %v977, -20.0
    %v1004 = vmax.f32 %v979, -20.0
    %v1005 = vmax.f32 %v982, -20.0
    %v1006 = vmax.f32 %v984, -20.0
    %v1007 = vmax.f32 %v987, -20.0
    %v1008 = vmax.f32 %v989, -20.0
    %v1009 = vmin.f32 %v993, 2.0
    %v1010 = vmin.f32 %v994, 2.0
    %v1011 = vmin.f32 %v995, 2.0
    %v1012 = vmin.f32 %v996, 2.0
    %v1013 = vmin.f32 %v997, 2.0
    %v1014 = vmin.f32 %v998, 2.0
    %v1015 = vmin.f32 %v999, 2.0
    %v1016 = vmin.f32 %v1000, 2.0
    %v1017 = vmin.f32 %v1001, 2.0
    %v1018 = vmin.f32 %v1002, 2.0
    %v1019 = vmin.f32 %v1003, 2.0
    %v1020 = vmin.f32 %v1004, 2.0
    %v1021 = vmin.f32 %v1005, 2.0
    %v1022 = vmin.f32 %v1006, 2.0
    %v1023 = vmin.f32 %v1007, 2.0
    %v1024 = vmin.f32 %v1008, 2.0
    %v1025 = vmul.f32 %v1009, 1.442695
    %v1026 = vpow.pop %v1025
    %v1027 = vmul.f32 %v1010, 1.442695
    %v1028 = vpow.pop %v1027
    %v1029 = vmul.f32 %v1011, 1.442695
    %v1030 = vpow.pop %v1029
    %v1031 = vmul.f32 %v1012, 1.442695
    %v1032 = vpow.pop %v1031
    %v1033 = vmul.f32 %v1013, 1.442695
    %v1034 = vpow.pop %v1033
    %v1035 = vmul.f32 %v1014, 1.442695
    %v1036 = vpow.pop %v1035
    %v1037 = vmul.f32 %v1015, 1.442695
    %v1038 = vpow.pop %v1037
    %v1039 = vmul.f32 %v1016, 1.442695
    %v1040 = vpow.pop %v1039
    %v1041 = vmul.f32 %v1017, 1.442695
    %v1042 = vpow.pop %v1041
    %v1043 = vmul.f32 %v1018, 1.442695
    %v1044 = vpow.pop %v1043
    %v1045 = vmul.f32 %v1019, 1.442695
    %v1046 = vpow.pop %v1045
    %v1047 = vmul.f32 %v1020, 1.442695
    %v1048 = vpow.pop %v1047
    %v1049 = vmul.f32 %v1021, 1.442695
    %v1050 = vpow.pop %v1049
    %v1051 = vmul.f32 %v1022, 1.442695
    %v1052 = vpow.pop %v1051
    %v1053 = vmul.f32 %v1023, 1.442695
    %v1054 = vpow.pop %v1053
    %v1055 = vmul.f32 %v1024, 1.442695
    %v1056 = vpow.pop %v1055
    %vm1057 = vcmp.ge.s32.totalorder %v992, 64
    %v1058 = vsel %vm1057, %v1026, %v952
    %v1059 = vsel %vm1057, %v1028, %v954
    %v1060 = vsel %vm1057, %v1030, %v957
    %v1061 = vsel %vm1057, %v1032, %v959
    %v1062 = vsel %vm1057, %v1034, %v962
    %v1063 = vsel %vm1057, %v1036, %v964
    %v1064 = vsel %vm1057, %v1038, %v967
    %v1065 = vsel %vm1057, %v1040, %v969
    %v1066 = vsel %vm1057, %v1042, %v972
    %v1067 = vsel %vm1057, %v1044, %v974
    %v1068 = vsel %vm1057, %v1046, %v977
    %v1069 = vsel %vm1057, %v1048, %v979
    %v1070 = vsel %vm1057, %v1050, %v982
    %v1071 = vsel %vm1057, %v1052, %v984
    %v1072 = vsel %vm1057, %v1054, %v987
    %v1073 = vsel %vm1057, %v1056, %v989
    %1074 = vst [vmem:[#allocation7] sm:$0xff] %v1058
    %1075 = vst [vmem:[#allocation7 + $0x8] sm:$0xff] %v1059
    %1076 = vst [vmem:[#allocation7 + $0x10] sm:$0xff] %v1060
    %1077 = vst [vmem:[#allocation7 + $0x18] sm:$0xff] %v1061
    %1078 = vst [vmem:[#allocation7 + $0x20] sm:$0xff] %v1062
    %1079 = vst [vmem:[#allocation7 + $0x28] sm:$0xff] %v1063
    %1080 = vst [vmem:[#allocation7 + $0x30] sm:$0xff] %v1064
    %1081 = vst [vmem:[#allocation7 + $0x38] sm:$0xff] %v1065
    %1082 = vst [vmem:[#allocation7 + $0x40] sm:$0xff] %v1066
    %1083 = vst [vmem:[#allocation7 + $0x48] sm:$0xff] %v1067
    %1084 = vst [vmem:[#allocation7 + $0x50] sm:$0xff] %v1068
    %1085 = vst [vmem:[#allocation7 + $0x58] sm:$0xff] %v1069
    %1086 = vst [vmem:[#allocation7 + $0x60] sm:$0xff] %v1070
    %1087 = vst [vmem:[#allocation7 + $0x68] sm:$0xff] %v1071
    %1088 = vst [vmem:[#allocation7 + $0x70] sm:$0xff] %v1072
    %1089 = vst [vmem:[#allocation7 + $0x78] sm:$0xff] %v1073
    // Predicated region
    $region38: #{tpu_custom_call.1} parent=1 // pred_check
      _
    $region39: #{tpu_custom_call.1} parent=1 // pred_check_branch
      %1091 = sbr.rel (0) target = $region41
    $region40: #{tpu_custom_call.1} parent=1 // pred_region
      %1093 = vsyncadd [#allocation4], 0
      %s1094 = sshll.u32 [#allocation7], 4
      %s1095 = int_to_ptr.vmem [resolvable:$true] %s1094
      %s1096 = sshll.u32 %s7, 4
      %s1097 = int_to_ptr.hbm [resolvable:$true] %s1096
      %1102 = dma.vmem_to_hbm [thread:$0]  %s1095, 2048, %s1097, [#allocation4], 128, 128, 8
    $region41: #{tpu_custom_call.1} parent=1 // pred_fallthru
      _
    // Predicated region
    $region42: #{tpu_custom_call.1} parent=1 // pred_check
      _
    $region43: #{tpu_custom_call.1} parent=1 // pred_check_branch
      %1104 = sbr.rel (0) target = $region45
    $region44: #{tpu_custom_call.1} parent=1 // pred_region
      %1106 = dma.done [#allocation4], 2048
    $region45: #{tpu_custom_call.1} parent=1 // pred_fallthru
      _
    %1107 = vsyncpa [#allocation3], 1
    %1108 = vsyncpa [#allocation6], 1
    %1109 = vsyncpa [#allocation4], 1

</llo_original>
